<compile_context>
chip_gen: v7x
topology: tpu7x:2x2x1
jax: 0.10.0
libtpu: 0.0.40
codegen_flags: <defaults>
</compile_context>

<pallas_src>
import functools

import jax
import jax.numpy as jnp
from jax.experimental import pallas as pl
from jax.experimental.pallas import tpu as pltpu

_VMEM_LIMIT = 48 * 1024 * 1024  # stays under v7x's 64 MiB physical VMEM


def _choose_tp(P, target):
    """Largest divisor of P that is <= target (P-tile size)."""
    if P <= target:
        return P
    for d in range(target, 0, -1):
        if P % d == 0:
            return d
    return P


# ----------------------------------------------------------------------------
# Pass 1: conv-as-matmul (bf16 MXU, f32 acc) + bias + partial IN statistics
# ----------------------------------------------------------------------------
def _conv_mm_kernel(p_ref, w_ref, b_ref, y_ref, stats_ref):
    # p_ref:    (TP, CK)  bf16 im2col patch tile of one sample
    # w_ref:    (CK, Cout) bf16 reshaped conv weight (VMEM-resident)
    # b_ref:    (1, Cout)  f32 bias
    # y_ref:    (TP, Cout) f32 conv + bias output tile
    # stats_ref:(2, Cout)  f32 [sum, sum_sq] accumulated over the P axis
    acc = jnp.dot(p_ref[...], w_ref[...], preferred_element_type=jnp.float32)
    acc = acc + b_ref[...]
    y_ref[...] = acc

    @pl.when(pl.program_id(1) == 0)
    def _():
        stats_ref[...] = jnp.zeros_like(stats_ref)

    tile_sum = jnp.sum(acc, axis=0, keepdims=True)
    tile_sq = jnp.sum(acc * acc, axis=0, keepdims=True)
    stats_ref[...] += jnp.concatenate([tile_sum, tile_sq], axis=0)


def _conv_matmul(patches, w_mat, bias, *, tp):
    """patches:[N,P,CK] bf16, w_mat:[CK,Cout] bf16, bias:[1,Cout] f32."""
    N, P, CK = patches.shape
    Cout = w_mat.shape[1]
    nP = P // tp
    return pl.pallas_call(
        _conv_mm_kernel,
        out_shape=(
            jax.ShapeDtypeStruct((N, P, Cout), jnp.float32),
            jax.ShapeDtypeStruct((N, 2, Cout), jnp.float32),
        ),
        grid_spec=pltpu.PrefetchScalarGridSpec(
            num_scalar_prefetch=0,
            grid=(N, nP),
            in_specs=[
                pl.BlockSpec((None, tp, CK), lambda n, p: (n, p, 0)),
                pl.BlockSpec((CK, Cout), lambda n, p: (0, 0)),   # stays in VMEM
                pl.BlockSpec((1, Cout), lambda n, p: (0, 0)),    # stays in VMEM
            ],
            out_specs=(
                pl.BlockSpec((None, tp, Cout), lambda n, p: (n, p, 0)),
                pl.BlockSpec((None, 2, Cout), lambda n, p: (n, 0, 0)),
            ),
        ),
        compiler_params=pltpu.CompilerParams(
            dimension_semantics=("parallel", "arbitrary"),
            vmem_limit_bytes=_VMEM_LIMIT,
        ),
    )(patches, w_mat, bias)


# ----------------------------------------------------------------------------
# Pass 2: InstanceNorm (E[x^2]-mean^2) + optional ReLU + optional residual add
# ----------------------------------------------------------------------------
def _norm_math(y, s, inv_p, relu):
    mean = s[0:1, :] * inv_p
    var = s[1:2, :] * inv_p - mean * mean
    out = (y - mean) * jax.lax.rsqrt(var + 1e-5)
    if relu:
        out = jnp.maximum(out, 0.0)
    return out


def _in_act_kernel(y_ref, stats_ref, o_ref, *, inv_p, relu):
    o_ref[...] = _norm_math(y_ref[...], stats_ref[...], inv_p, relu).astype(o_ref.dtype)


def _in_act_res_kernel(y_ref, stats_ref, r_ref, o_ref, *, inv_p, relu):
    out = _norm_math(y_ref[...], stats_ref[...], inv_p, relu) + r_ref[...]
    o_ref[...] = out.astype(o_ref.dtype)


def _instance_norm_act(y, stats, residual, *, relu, tp):
    N, P, Cout = y.shape
    nP = P // tp
    inv_p = 1.0 / float(P)
    in_specs = [
        pl.BlockSpec((None, tp, Cout), lambda n, p: (n, p, 0)),
        pl.BlockSpec((None, 2, Cout), lambda n, p: (n, 0, 0)),
    ]
    inputs = [y, stats]
    if residual is not None:
        in_specs.append(pl.BlockSpec((None, tp, Cout), lambda n, p: (n, p, 0)))
        inputs.append(residual)
        kernel = functools.partial(_in_act_res_kernel, inv_p=inv_p, relu=relu)
    else:
        kernel = functools.partial(_in_act_kernel, inv_p=inv_p, relu=relu)
    return pl.pallas_call(
        kernel,
        out_shape=jax.ShapeDtypeStruct((N, P, Cout), jnp.float32),
        grid_spec=pltpu.PrefetchScalarGridSpec(
            num_scalar_prefetch=0,
            grid=(N, nP),
            in_specs=in_specs,
            out_specs=pl.BlockSpec((None, tp, Cout), lambda n, p: (n, p, 0)),
        ),
        compiler_params=pltpu.CompilerParams(
            dimension_semantics=("parallel", "parallel"),
            vmem_limit_bytes=_VMEM_LIMIT,
        ),
    )(*inputs)


# ----------------------------------------------------------------------------
# JAX glue: reflect pad + NHWC im2col (no transposes), one conv+IN(+act) layer
# ----------------------------------------------------------------------------
def _im2col_nhwc(x, k):
    """x: [N, Hp, Wp, C] -> patches [N, Ho*Wo, k*k*C], CK ordered (dy, dx, c)."""
    N, Hp, Wp, C = x.shape
    Ho, Wo = Hp - k + 1, Wp - k + 1
    cols = []
    for dy in range(k):
        for dx in range(k):
            cols.append(x[:, dy:dy + Ho, dx:dx + Wo, :])
    p = jnp.stack(cols, axis=3)                    # [N, Ho, Wo, k*k, C]
    return p.reshape(N, Ho * Wo, k * k * C), Ho, Wo


def conv_in_layer(x, w, b, *, relu, residual=None, tp_target=1024):
    """x: [N,H,W,C] NHWC; w: [Cout,Cin,k,k]; b: [Cout] -> [N,H,W,Cout]."""
    N, H, W, Cin = x.shape
    Cout, _, k, _ = w.shape
    pad = (k - 1) // 2
    xp = jnp.pad(x, ((0, 0), (pad, pad), (pad, pad), (0, 0)), mode="reflect")
    patches, Ho, Wo = _im2col_nhwc(xp, k)
    P = Ho * Wo
    tp = _choose_tp(P, tp_target)
    # bf16 MXU inputs; accumulation stays f32 inside the kernel.
    patches_bf = patches.astype(jnp.bfloat16)
    w_mat = jnp.transpose(w, (2, 3, 1, 0)).reshape(k * k * Cin, Cout).astype(jnp.bfloat16)
    bias = b.reshape(1, Cout).astype(jnp.float32)
    y, stats = _conv_matmul(patches_bf, w_mat, bias, tp=tp)
    res = None if residual is None else residual.reshape(N, P, Cout)
    out = _instance_norm_act(y, stats, res, relu=relu, tp=tp)
    return out.reshape(N, Ho, Wo, Cout)


# ----------------------------------------------------------------------------
# ResidBlock: params + forward
# ----------------------------------------------------------------------------
def init_resid_block_params(key, channels, k=3):
    def conv_params(key, cin, cout):
        kw, kb = jax.random.split(key)
        bound = 1.0 / float((cin * k * k) ** 0.5)
        w = jax.random.uniform(kw, (cout, cin, k, k), jnp.float32, -bound, bound)
        b = jax.random.uniform(kb, (cout,), jnp.float32, -bound, bound)
        return w, b

    k1, k2 = jax.random.split(key)
    return {"conv1": conv_params(k1, channels, channels),
            "conv2": conv_params(k2, channels, channels)}


def resid_block_forward(params, x_nchw, *, tp_target=1024):
    x = jnp.transpose(x_nchw, (0, 2, 3, 1))        # single NCHW -> NHWC transpose
    w1, b1 = params["conv1"]
    w2, b2 = params["conv2"]
    h = conv_in_layer(x, w1, b1, relu=True, tp_target=tp_target)
    out = conv_in_layer(h, w2, b2, relu=False, residual=x, tp_target=tp_target)
    return jnp.transpose(out, (0, 3, 1, 2))        # back to NCHW


# ----------------------------------------------------------------------------
# Pure-JAX reference (f32) for validation
# ----------------------------------------------------------------------------
def _ref_conv_in(x, w, b, relu):
    k = w.shape[-1]
    pad = (k - 1) // 2
    xp = jnp.pad(x, ((0, 0), (pad, pad), (pad, pad), (0, 0)), mode="reflect")
    out = jax.lax.conv_general_dilated(
        xp, jnp.transpose(w, (2, 3, 1, 0)),
        window_strides=(1, 1), padding="VALID",
        dimension_numbers=("NHWC", "HWIO", "NHWC"))
    out = out + b.reshape(1, 1, 1, -1)
    mean = out.mean(axis=(1, 2), keepdims=True)
    var = ((out - mean) ** 2).mean(axis=(1, 2), keepdims=True)
    out = (out - mean) * jax.lax.rsqrt(var + 1e-5)
    return jnp.maximum(out, 0.0) if relu else out


def resid_block_reference(params, x_nchw):
    x = jnp.transpose(x_nchw, (0, 2, 3, 1))
    w1, b1 = params["conv1"]
    w2, b2 = params["conv2"]
    h = _ref_conv_in(x, w1, b1, True)
    out = x + _ref_conv_in(h, w2, b2, False)
    return jnp.transpose(out, (0, 3, 1, 2))


if __name__ == "__main__":
    key = jax.random.PRNGKey(0)
    k_param, k_x = jax.random.split(key)

    channels, N, H, W = 4, 2, 16, 16
    params = init_resid_block_params(k_param, channels)
    x = jax.random.normal(k_x, (N, channels, H, W), jnp.float32)

    # tp_target=64 -> 4 P-tiles per sample at 16x16, exercising the tiled
    # accumulate-then-normalize InstanceNorm path even at toy sizes.
    fwd = jax.jit(functools.partial(resid_block_forward, tp_target=64))
    out = jax.block_until_ready(fwd(params, x))

    assert out.shape == (N, channels, H, W), out.shape
    ref = resid_block_reference(params, x)
    err = float(jnp.max(jnp.abs(out - ref)))
    assert err < 0.2, f"max abs err vs f32 reference: {err}"
    print("KERNEL_OK")
</pallas_src>

<mosaic_0001>
module attributes {stable_mosaic.version = 11 : i64} {
  func.func @_in_act_kernel(%arg0: i32, %arg1: i32, %arg2: memref<1x64x4xf32, #tpu.memory_space<vmem>>, %arg3: memref<1x2x4xf32, #tpu.memory_space<vmem>>, %arg4: memref<1x64x4xf32, #tpu.memory_space<vmem>>) attributes {dimension_semantics = [#tpu.dimension_semantics<parallel>, #tpu.dimension_semantics<parallel>], iteration_bounds = array<i64: 2, 4>, scalar_prefetch = 0 : i64, scratch_operands = 0 : i64, tpu.core_type = #tpu.core_type<tc>, window_params = [{transform_indices = @transform_0, window_bounds = array<i64: 1, 64, 4>}, {transform_indices = @transform_1, window_bounds = array<i64: 1, 2, 4>}, {transform_indices = @transform_2, window_bounds = array<i64: 1, 64, 4>}]} {
    %c0 = arith.constant 0 : index
    %c0_0 = arith.constant 0 : index
    %c0_1 = arith.constant 0 : index
    %0 = vector.load %arg2[%c0, %c0_0, %c0_1] : memref<1x64x4xf32, #tpu.memory_space<vmem>>, vector<1x64x4xf32>
    %1 = vector.shape_cast %0 : vector<1x64x4xf32> to vector<64x4xf32>
    %c0_2 = arith.constant 0 : index
    %c0_3 = arith.constant 0 : index
    %c0_4 = arith.constant 0 : index
    %2 = vector.load %arg3[%c0_2, %c0_3, %c0_4] : memref<1x2x4xf32, #tpu.memory_space<vmem>>, vector<1x2x4xf32>
    %3 = vector.shape_cast %2 : vector<1x2x4xf32> to vector<2x4xf32>
    %4 = vector.extract_strided_slice %3 {offsets = [0, 0], sizes = [1, 4], strides = [1, 1]} : vector<2x4xf32> to vector<1x4xf32>
    %cst = arith.constant 3.906250e-03 : f32
    %5 = vector.broadcast %cst : f32 to vector<1x4xf32>
    %6 = arith.mulf %4, %5 : vector<1x4xf32>
    %7 = vector.extract_strided_slice %3 {offsets = [1, 0], sizes = [1, 4], strides = [1, 1]} : vector<2x4xf32> to vector<1x4xf32>
    %cst_5 = arith.constant 3.906250e-03 : f32
    %8 = vector.broadcast %cst_5 : f32 to vector<1x4xf32>
    %9 = arith.mulf %7, %8 : vector<1x4xf32>
    %10 = arith.mulf %6, %6 : vector<1x4xf32>
    %11 = arith.subf %9, %10 : vector<1x4xf32>
    %12 = vector.broadcast %6 : vector<1x4xf32> to vector<64x4xf32>
    %13 = arith.subf %1, %12 : vector<64x4xf32>
    %cst_6 = arith.constant 9.99999974E-6 : f32
    %14 = vector.broadcast %cst_6 : f32 to vector<1x4xf32>
    %15 = arith.addf %11, %14 : vector<1x4xf32>
    %16 = math.rsqrt %15 : vector<1x4xf32>
    %17 = vector.broadcast %16 : vector<1x4xf32> to vector<64x4xf32>
    %18 = arith.mulf %13, %17 : vector<64x4xf32>
    %cst_7 = arith.constant 0.000000e+00 : f32
    %19 = vector.broadcast %cst_7 : f32 to vector<64x4xf32>
    %20 = arith.maximumf %18, %19 : vector<64x4xf32>
    %c0_8 = arith.constant 0 : index
    %c0_9 = arith.constant 0 : index
    %c0_10 = arith.constant 0 : index
    %21 = vector.load %arg4[%c0_8, %c0_9, %c0_10] : memref<1x64x4xf32, #tpu.memory_space<vmem>>, vector<1x64x4xf32>
    %22 = vector.shape_cast %21 : vector<1x64x4xf32> to vector<64x4xf32>
    %23 = vector.shape_cast %20 : vector<64x4xf32> to vector<1x64x4xf32>
    tpu.vector_store %arg4[%c0_8, %c0_9, %c0_10], %23 {strides = array<i32>} : memref<1x64x4xf32, #tpu.memory_space<vmem>>, vector<1x64x4xf32>,
    return
  }
  func.func @transform_0(%arg0: i32, %arg1: i32) -> (i32, i32, i32) {
    %c0_i32 = arith.constant 0 : i32
    %c0_i32_0 = arith.constant 0 : i32
    return %arg0, %arg1, %c0_i32 : i32, i32, i32
  }
  func.func @transform_1(%arg0: i32, %arg1: i32) -> (i32, i32, i32) {
    %c0_i32 = arith.constant 0 : i32
    %c0_i32_0 = arith.constant 0 : i32
    %c0_i32_1 = arith.constant 0 : i32
    return %arg0, %c0_i32, %c0_i32_0 : i32, i32, i32
  }
  func.func @transform_2(%arg0: i32, %arg1: i32) -> (i32, i32, i32) {
    %c0_i32 = arith.constant 0 : i32
    %c0_i32_0 = arith.constant 0 : i32
    return %arg0, %arg1, %c0_i32 : i32, i32, i32
  }
}

module attributes {stable_mosaic.version = 11 : i64} {
  func.func @_conv_mm_kernel(%arg0: i32, %arg1: i32, %arg2: memref<1x64x36xbf16, #tpu.memory_space<vmem>>, %arg3: memref<36x4xbf16, #tpu.memory_space<vmem>>, %arg4: memref<1x4xf32, #tpu.memory_space<vmem>>, %arg5: memref<1x64x4xf32, #tpu.memory_space<vmem>>, %arg6: memref<1x2x4xf32, #tpu.memory_space<vmem>>) attributes {dimension_semantics = [#tpu.dimension_semantics<parallel>, #tpu.dimension_semantics<arbitrary>], iteration_bounds = array<i64: 2, 4>, scalar_prefetch = 0 : i64, scratch_operands = 0 : i64, tpu.core_type = #tpu.core_type<tc>, window_params = [{transform_indices = @transform_0, window_bounds = array<i64: 1, 64, 36>}, {pipeline_mode = #tpu.pipeline_mode<synchronous>, transform_indices = @transform_1, window_bounds = array<i64: 36, 4>}, {pipeline_mode = #tpu.pipeline_mode<synchronous>, transform_indices = @transform_2, window_bounds = array<i64: 1, 4>}, {transform_indices = @transform_3, window_bounds = array<i64: 1, 64, 4>}, {transform_indices = @transform_4, window_bounds = array<i64: 1, 2, 4>}]} {
    %c0 = arith.constant 0 : index
    %c0_0 = arith.constant 0 : index
    %c0_1 = arith.constant 0 : index
    %0 = vector.load %arg2[%c0, %c0_0, %c0_1] : memref<1x64x36xbf16, #tpu.memory_space<vmem>>, vector<1x64x36xbf16>
    %1 = vector.shape_cast %0 : vector<1x64x36xbf16> to vector<64x36xbf16>
    %c0_2 = arith.constant 0 : index
    %c0_3 = arith.constant 0 : index
    %2 = vector.load %arg3[%c0_2, %c0_3] : memref<36x4xbf16, #tpu.memory_space<vmem>>, vector<36x4xbf16>
    %cst = arith.constant dense<0.000000e+00> : vector<64x4xf32>
    %3 = tpu.matmul %1, %2, %cst {dimension_numbers = #tpu.dot_dimension_numbers<[1], [0], [0], [1], [0, 0, 1, 1], [], []>} : vector<64x36xbf16>, vector<36x4xbf16>, vector<64x4xf32> -> vector<64x4xf32>
    %c0_4 = arith.constant 0 : index
    %c0_5 = arith.constant 0 : index
    %4 = vector.load %arg4[%c0_4, %c0_5] : memref<1x4xf32, #tpu.memory_space<vmem>>, vector<1x4xf32>
    %5 = vector.broadcast %4 : vector<1x4xf32> to vector<64x4xf32>
    %6 = arith.addf %3, %5 : vector<64x4xf32>
    %c0_6 = arith.constant 0 : index
    %c0_7 = arith.constant 0 : index
    %c0_8 = arith.constant 0 : index
    %7 = vector.load %arg5[%c0_6, %c0_7, %c0_8] : memref<1x64x4xf32, #tpu.memory_space<vmem>>, vector<1x64x4xf32>
    %8 = vector.shape_cast %7 : vector<1x64x4xf32> to vector<64x4xf32>
    %9 = vector.shape_cast %6 : vector<64x4xf32> to vector<1x64x4xf32>
    tpu.vector_store %arg5[%c0_6, %c0_7, %c0_8], %9 {strides = array<i32>} : memref<1x64x4xf32, #tpu.memory_space<vmem>>, vector<1x64x4xf32>,
    %c0_i32 = arith.constant 0 : i32
    %10 = arith.cmpi eq, %arg1, %c0_i32 : i32
    %11 = arith.extui %10 : i1 to i32
    %c0_i32_9 = arith.constant 0 : i32
    %12 = arith.cmpi ne, %11, %c0_i32_9 : i32
    scf.if %12 {
      %cst_18 = arith.constant 0.000000e+00 : f32
      %25 = vector.broadcast %cst_18 : f32 to vector<2x4xf32>
      %c0_19 = arith.constant 0 : index
      %c0_20 = arith.constant 0 : index
      %c0_21 = arith.constant 0 : index
      %26 = vector.load %arg6[%c0_19, %c0_20, %c0_21] : memref<1x2x4xf32, #tpu.memory_space<vmem>>, vector<1x2x4xf32>
      %27 = vector.shape_cast %26 : vector<1x2x4xf32> to vector<2x4xf32>
      %28 = vector.shape_cast %25 : vector<2x4xf32> to vector<1x2x4xf32>
      tpu.vector_store %arg6[%c0_19, %c0_20, %c0_21], %28 {strides = array<i32>} : memref<1x2x4xf32, #tpu.memory_space<vmem>>, vector<1x2x4xf32>,
    } else {
    }
    %cst_10 = arith.constant dense<0.000000e+00> : vector<4xf32>
    %13 = vector.multi_reduction <add>, %6, %cst_10 [0] : vector<64x4xf32> to vector<4xf32>
    %14 = vector.shape_cast %13 : vector<4xf32> to vector<1x4xf32>
    %15 = arith.mulf %6, %6 : vector<64x4xf32>
    %cst_11 = arith.constant dense<0.000000e+00> : vector<4xf32>
    %16 = vector.multi_reduction <add>, %15, %cst_11 [0] : vector<64x4xf32> to vector<4xf32>
    %17 = vector.shape_cast %16 : vector<4xf32> to vector<1x4xf32>
    %c0_12 = arith.constant 0 : index
    %c0_13 = arith.constant 0 : index
    %c0_14 = arith.constant 0 : index
    %18 = vector.load %arg6[%c0_12, %c0_13, %c0_14] : memref<1x2x4xf32, #tpu.memory_space<vmem>>, vector<1x2x4xf32>
    %19 = vector.shape_cast %18 : vector<1x2x4xf32> to vector<2x4xf32>
    %20 = tpu.concatenate %14, %17 in 0 : vector<1x4xf32>, vector<1x4xf32> -> vector<2x4xf32>
    %21 = arith.addf %19, %20 : vector<2x4xf32>
    %c0_15 = arith.constant 0 : index
    %c0_16 = arith.constant 0 : index
    %c0_17 = arith.constant 0 : index
    %22 = vector.load %arg6[%c0_15, %c0_16, %c0_17] : memref<1x2x4xf32, #tpu.memory_space<vmem>>, vector<1x2x4xf32>
    %23 = vector.shape_cast %22 : vector<1x2x4xf32> to vector<2x4xf32>
    %24 = vector.shape_cast %21 : vector<2x4xf32> to vector<1x2x4xf32>
    tpu.vector_store %arg6[%c0_15, %c0_16, %c0_17], %24 {strides = array<i32>} : memref<1x2x4xf32, #tpu.memory_space<vmem>>, vector<1x2x4xf32>,
    return
  }
  func.func @transform_0(%arg0: i32, %arg1: i32) -> (i32, i32, i32) {
    %c0_i32 = arith.constant 0 : i32
    %c0_i32_0 = arith.constant 0 : i32
    return %arg0, %arg1, %c0_i32 : i32, i32, i32
  }
  func.func @transform_1(%arg0: i32, %arg1: i32) -> (i32, i32) {
    %c0_i32 = arith.constant 0 : i32
    %c0_i32_0 = arith.constant 0 : i32
    %c0_i32_1 = arith.constant 0 : i32
    return %c0_i32, %c0_i32_0 : i32, i32
  }
  func.func @transform_2(%arg0: i32, %arg1: i32) -> (i32, i32) {
    %c0_i32 = arith.constant 0 : i32
    %c0_i32_0 = arith.constant 0 : i32
    %c0_i32_1 = arith.constant 0 : i32
    return %c0_i32, %c0_i32_0 : i32, i32
  }
  func.func @transform_3(%arg0: i32, %arg1: i32) -> (i32, i32, i32) {
    %c0_i32 = arith.constant 0 : i32
    %c0_i32_0 = arith.constant 0 : i32
    return %arg0, %arg1, %c0_i32 : i32, i32, i32
  }
  func.func @transform_4(%arg0: i32, %arg1: i32) -> (i32, i32, i32) {
    %c0_i32 = arith.constant 0 : i32
    %c0_i32_0 = arith.constant 0 : i32
    %c0_i32_1 = arith.constant 0 : i32
    return %arg0, %c0_i32, %c0_i32_0 : i32, i32, i32
  }
}

module attributes {stable_mosaic.version = 11 : i64} {
  func.func @_in_act_res_kernel(%arg0: i32, %arg1: i32, %arg2: memref<1x64x4xf32, #tpu.memory_space<vmem>>, %arg3: memref<1x2x4xf32, #tpu.memory_space<vmem>>, %arg4: memref<1x64x4xf32, #tpu.memory_space<vmem>>, %arg5: memref<1x64x4xf32, #tpu.memory_space<vmem>>) attributes {dimension_semantics = [#tpu.dimension_semantics<parallel>, #tpu.dimension_semantics<parallel>], iteration_bounds = array<i64: 2, 4>, scalar_prefetch = 0 : i64, scratch_operands = 0 : i64, tpu.core_type = #tpu.core_type<tc>, window_params = [{transform_indices = @transform_0, window_bounds = array<i64: 1, 64, 4>}, {transform_indices = @transform_1, window_bounds = array<i64: 1, 2, 4>}, {transform_indices = @transform_2, window_bounds = array<i64: 1, 64, 4>}, {transform_indices = @transform_3, window_bounds = array<i64: 1, 64, 4>}]} {
    %c0 = arith.constant 0 : index
    %c0_0 = arith.constant 0 : index
    %c0_1 = arith.constant 0 : index
    %0 = vector.load %arg2[%c0, %c0_0, %c0_1] : memref<1x64x4xf32, #tpu.memory_space<vmem>>, vector<1x64x4xf32>
    %1 = vector.shape_cast %0 : vector<1x64x4xf32> to vector<64x4xf32>
    %c0_2 = arith.constant 0 : index
    %c0_3 = arith.constant 0 : index
    %c0_4 = arith.constant 0 : index
    %2 = vector.load %arg3[%c0_2, %c0_3, %c0_4] : memref<1x2x4xf32, #tpu.memory_space<vmem>>, vector<1x2x4xf32>
    %3 = vector.shape_cast %2 : vector<1x2x4xf32> to vector<2x4xf32>
    %4 = vector.extract_strided_slice %3 {offsets = [0, 0], sizes = [1, 4], strides = [1, 1]} : vector<2x4xf32> to vector<1x4xf32>
    %cst = arith.constant 3.906250e-03 : f32
    %5 = vector.broadcast %cst : f32 to vector<1x4xf32>
    %6 = arith.mulf %4, %5 : vector<1x4xf32>
    %7 = vector.extract_strided_slice %3 {offsets = [1, 0], sizes = [1, 4], strides = [1, 1]} : vector<2x4xf32> to vector<1x4xf32>
    %cst_5 = arith.constant 3.906250e-03 : f32
    %8 = vector.broadcast %cst_5 : f32 to vector<1x4xf32>
    %9 = arith.mulf %7, %8 : vector<1x4xf32>
    %10 = arith.mulf %6, %6 : vector<1x4xf32>
    %11 = arith.subf %9, %10 : vector<1x4xf32>
    %12 = vector.broadcast %6 : vector<1x4xf32> to vector<64x4xf32>
    %13 = arith.subf %1, %12 : vector<64x4xf32>
    %cst_6 = arith.constant 9.99999974E-6 : f32
    %14 = vector.broadcast %cst_6 : f32 to vector<1x4xf32>
    %15 = arith.addf %11, %14 : vector<1x4xf32>
    %16 = math.rsqrt %15 : vector<1x4xf32>
    %17 = vector.broadcast %16 : vector<1x4xf32> to vector<64x4xf32>
    %18 = arith.mulf %13, %17 : vector<64x4xf32>
    %c0_7 = arith.constant 0 : index
    %c0_8 = arith.constant 0 : index
    %c0_9 = arith.constant 0 : index
    %19 = vector.load %arg4[%c0_7, %c0_8, %c0_9] : memref<1x64x4xf32, #tpu.memory_space<vmem>>, vector<1x64x4xf32>
    %20 = vector.shape_cast %19 : vector<1x64x4xf32> to vector<64x4xf32>
    %21 = arith.addf %18, %20 : vector<64x4xf32>
    %c0_10 = arith.constant 0 : index
    %c0_11 = arith.constant 0 : index
    %c0_12 = arith.constant 0 : index
    %22 = vector.load %arg5[%c0_10, %c0_11, %c0_12] : memref<1x64x4xf32, #tpu.memory_space<vmem>>, vector<1x64x4xf32>
    %23 = vector.shape_cast %22 : vector<1x64x4xf32> to vector<64x4xf32>
    %24 = vector.shape_cast %21 : vector<64x4xf32> to vector<1x64x4xf32>
    tpu.vector_store %arg5[%c0_10, %c0_11, %c0_12], %24 {strides = array<i32>} : memref<1x64x4xf32, #tpu.memory_space<vmem>>, vector<1x64x4xf32>,
    return
  }
  func.func @transform_0(%arg0: i32, %arg1: i32) -> (i32, i32, i32) {
    %c0_i32 = arith.constant 0 : i32
    %c0_i32_0 = arith.constant 0 : i32
    return %arg0, %arg1, %c0_i32 : i32, i32, i32
  }
  func.func @transform_1(%arg0: i32, %arg1: i32) -> (i32, i32, i32) {
    %c0_i32 = arith.constant 0 : i32
    %c0_i32_0 = arith.constant 0 : i32
    %c0_i32_1 = arith.constant 0 : i32
    return %arg0, %c0_i32, %c0_i32_0 : i32, i32, i32
  }
  func.func @transform_2(%arg0: i32, %arg1: i32) -> (i32, i32, i32) {
    %c0_i32 = arith.constant 0 : i32
    %c0_i32_0 = arith.constant 0 : i32
    return %arg0, %arg1, %c0_i32 : i32, i32, i32
  }
  func.func @transform_3(%arg0: i32, %arg1: i32) -> (i32, i32, i32) {
    %c0_i32 = arith.constant 0 : i32
    %c0_i32_0 = arith.constant 0 : i32
    return %arg0, %arg1, %c0_i32 : i32, i32, i32
  }
}

</mosaic_0001>

<llo_original>
// kernel: resid_block_forward.5
$region0: #{resid_block_forward.5}
  #allocation0 [shape = 'u32[]', space=smem, size = 0x4, offset = 0x4, fixed_abs, tag = 'smem constant byte address 0x4 - core index']
  #allocation1 [shape = 'u32[144,128]{1,0:T(1,128)}', space=vmem, size = 0x12000, scoped, tag = 'internal scratch']
  %s0 = inlined_call_operand.vmem [shape: f32[2,256,4], index: 0, kind: input, shape index: {}]
  %s1 = inlined_call_operand.vmem [shape: f32[2,2,4], index: 1, kind: input, shape index: {}]
  %s2 = inlined_call_operand.vmem [shape: f32[2,256,4], index: 2, kind: output, shape index: {}]
  %s3 = sld [smem:[#allocation0]]
  $region41: #{resid_block_forward.5} parent=0
    _
  %s5 = ssub.s32 1, %s3
  %s6 = scalar_select 0, %s5, %s3
  loop: start=0, step=1, limit=10
  $region2: #{resid_block_forward.5} parent=0 // loop_pre_header
    _
  $region3: #{resid_block_forward.5} parent=0 // loop_header
    %s8 = sphi 0, %s12
    %p9 = scmp.ge.s32.totalorder %s8, 10
    %s15 = sphi 0, %s27
    %s16 = sphi 0, %s23
    %s17 = sphi 0, %s15
    %s18 = sphi 0, %s16
    %s19 = sphi 0, %s17
    %s20 = sphi 0, %s18
    %s32 = sphi 0, %s34
    %s35 = sphi 0, %s32
    %s36 = sphi 0, %s35
    %s52 = sphi 0, %s36
    %s58 = sphi 0, %s60
    %s61 = sphi 0, %s58
    %s62 = sphi 0, %s61
    %s78 = sphi 0, %s62
    %s86 = sphi 0, %s88
    %s89 = sphi 0, %s86
    %s90 = sphi 0, %s89
    %s106 = sphi 0, %s90
  $region4: #{resid_block_forward.5} parent=0 // loop_header_branch
    %11 = sbr.rel (%p9) target = $region8
  $region5: #{resid_block_forward.5} parent=0 // loop_body
    %s13 = ssub.s32 %s8, 1
    %s14 = ssub.s32 %s8, 2
    %s21 = sadd.s32 1, %s16
    %p22 = scmp.ge.s32.totalorder %s21, 4
    %s23 = scalar_select %p22, 0, %s21
    %s24 = sadd.s32 1, %s15
    %s25 = scalar_select %p22, %s24, %s15
    %p26 = scmp.ge.s32.totalorder %s25, 2
    %s27 = scalar_select %p26, 0, %s25
    %s28 = ssub.s32 %s15, %s27
    %s29 = ssub.s32 %s16, %s23
    %s30 = sor.u32 %s28, %s29
    %p31 = scmp.eq.s32.totalorder %s30, 0
    %s33 = sadd.s32 %s32, 1
    %s34 = scalar_select %p31, %s32, %s33
    %p37 = pneg %p31
    %p38 = scmp.eq.s32.totalorder %s8, 7
    %p39 = por %p37, %p38
    %p40 = scmp.ne.s32.totalorder %s32, %s35
    %p41 = scmp.eq.s32.totalorder %s8, 0
    %p42 = por %p40, %p41
    %p43 = scmp.ne.s32.totalorder %s32, %s35
    %p44 = scmp.eq.s32.totalorder %s13, 7
    %p45 = por %p43, %p44
    %p46 = scmp.ne.s32.totalorder %s35, %s36
    %p47 = scmp.eq.s32.totalorder %s13, 0
    %p48 = por %p46, %p47
    %p49 = scmp.ne.s32.totalorder %s35, %s36
    %p50 = scmp.eq.s32.totalorder %s14, 7
    %p51 = por %p49, %p50
    %p53 = scmp.ne.s32.totalorder %s36, %s52
    %p54 = scmp.eq.s32.totalorder %s14, 0
    %p55 = por %p53, %p54
    %s56 = ssub.s32 %s15, %s27
    %p57 = scmp.eq.s32.totalorder %s56, 0
    %s59 = sadd.s32 %s58, 1
    %s60 = scalar_select %p57, %s58, %s59
    %p63 = pneg %p57
    %p64 = scmp.eq.s32.totalorder %s8, 7
    %p65 = por %p63, %p64
    %p66 = scmp.ne.s32.totalorder %s58, %s61
    %p67 = scmp.eq.s32.totalorder %s8, 0
    %p68 = por %p66, %p67
    %p69 = scmp.ne.s32.totalorder %s58, %s61
    %p70 = scmp.eq.s32.totalorder %s13, 7
    %p71 = por %p69, %p70
    %p72 = scmp.ne.s32.totalorder %s61, %s62
    %p73 = scmp.eq.s32.totalorder %s13, 0
    %p74 = por %p72, %p73
    %p75 = scmp.ne.s32.totalorder %s61, %s62
    %p76 = scmp.eq.s32.totalorder %s14, 7
    %p77 = por %p75, %p76
    %p79 = scmp.ne.s32.totalorder %s62, %s78
    %p80 = scmp.eq.s32.totalorder %s14, 0
    %p81 = por %p79, %p80
    %s82 = ssub.s32 %s15, %s27
    %s83 = ssub.s32 %s16, %s23
    %s84 = sor.u32 %s82, %s83
    %p85 = scmp.eq.s32.totalorder %s84, 0
    %s87 = sadd.s32 %s86, 1
    %s88 = scalar_select %p85, %s86, %s87
    %p91 = pneg %p85
    %p92 = scmp.eq.s32.totalorder %s8, 7
    %p93 = por %p91, %p92
    %p94 = scmp.ne.s32.totalorder %s86, %s89
    %p95 = scmp.eq.s32.totalorder %s8, 0
    %p96 = por %p94, %p95
    %p97 = scmp.ne.s32.totalorder %s86, %s89
    %p98 = scmp.eq.s32.totalorder %s13, 7
    %p99 = por %p97, %p98
    %p100 = scmp.ne.s32.totalorder %s89, %s90
    %p101 = scmp.eq.s32.totalorder %s13, 0
    %p102 = por %p100, %p101
    %p103 = scmp.ne.s32.totalorder %s89, %s90
    %p104 = scmp.eq.s32.totalorder %s14, 7
    %p105 = por %p103, %p104
    %p107 = scmp.ne.s32.totalorder %s90, %s106
    %p108 = scmp.eq.s32.totalorder %s14, 0
    %p109 = por %p107, %p108
    %p110 = scmp.le.s32.totalorder 1, %s8
    %p111 = scmp.lt.s32.totalorder %s8, 9
    %p112 = pnand %p110, %p111
    %p113 = pneg %p112
    // Predicated region
    $region9: #{resid_block_forward.5} parent=5 // pred_check
      _
    $region10: #{resid_block_forward.5} parent=5 // pred_check_branch
      %115 = sbr.rel (%p112) target = $region12
    $region11: #{resid_block_forward.5} parent=5 // pred_region
      %s116 = ssub.s32 %s8, 1
    $region12: #{resid_block_forward.5} parent=5 // pred_fallthru
      _
    %p117 = scmp.lt.s32.totalorder %s8, 8
    // Predicated region
    $region13: #{resid_block_forward.5} parent=5 // pred_check
      %p118 = pneg %p117
    $region14: #{resid_block_forward.5} parent=5 // pred_check_branch
      %120 = sbr.rel (%p118) target = $region16
    $region15: #{resid_block_forward.5} parent=5 // pred_region
      // Predicated region
      $region17: #{resid_block_forward.5} parent=15 // pred_check
        %p121 = pneg %p42
      $region18: #{resid_block_forward.5} parent=15 // pred_check_branch
        %123 = sbr.rel (%p121) target = $region20
      $region19: #{resid_block_forward.5} parent=15 // pred_region
        %s124 = smul.u32 8, %s16
        %p125 = scmp.lt.s32.totalorder %s15, 1
        %s126 = scalar_select %p125, %s15, 1
        %p127 = scmp.lt.s32.totalorder %s124, 31
        %s128 = scalar_select %p127, %s124, 31
        %s129 = smul.addr %s126, 32
        %s130 = sadd.s32 %s128, %s129
        %s131 = smul.addr %s130, 8
        %s132 = scalar_lea.vmem %s0, %s131
        %s133 = smul.u32 8, %s16
      $region20: #{resid_block_forward.5} parent=15 // pred_fallthru
        _
      // Predicated region
      $region21: #{resid_block_forward.5} parent=15 // pred_check
        %p134 = pneg %p68
      $region22: #{resid_block_forward.5} parent=15 // pred_check_branch
        %136 = sbr.rel (%p134) target = $region24
      $region23: #{resid_block_forward.5} parent=15 // pred_region
        %p137 = scmp.lt.s32.totalorder %s15, 1
        %s138 = scalar_select %p137, %s15, 1
        %s139 = smul.addr %s138, 2
        %s140 = scalar_lea.vmem %s1, %s139
      $region24: #{resid_block_forward.5} parent=15 // pred_fallthru
        _
    $region16: #{resid_block_forward.5} parent=5 // pred_fallthru
      _
    %p141 = scmp.le.s32.totalorder 1, %s8
    %p142 = scmp.lt.s32.totalorder %s8, 9
    %p143 = pnand %p141, %p142
    %p144 = pneg %p143
    // Predicated region
    $region25: #{resid_block_forward.5} parent=5 // pred_check
      _
    $region26: #{resid_block_forward.5} parent=5 // pred_check_branch
      %146 = sbr.rel (%p143) target = $region28
    $region27: #{resid_block_forward.5} parent=5 // pred_region
      %s147 = ssub.s32 %s8, 1
      %s148 = smul.u32 8, %s18
      %p149 = scmp.lt.s32.totalorder %s17, 1
      %s150 = scalar_select %p149, %s17, 1
      %p151 = scmp.lt.s32.totalorder %s148, 31
      %s152 = scalar_select %p151, %s148, 31
      %s153 = smul.addr %s150, 32
      %s154 = sadd.s32 %s152, %s153
      %s155 = smul.addr %s154, 8
      %s156 = scalar_lea.vmem %s0, %s155
      %p157 = pneg %p48
      %p158 = pneg %p45
      %p159 = scmp.lt.s32.totalorder %s17, 1
      %s160 = scalar_select %p159, %s17, 1
      %s161 = smul.addr %s160, 2
      %s162 = scalar_lea.vmem %s1, %s161
      %p163 = pneg %p74
      %p164 = pneg %p71
      %p165 = pneg %p102
      %p166 = pneg %p99
      %s167 = smul.u32 8, %s18
      %p168 = scmp.lt.s32.totalorder %s17, 1
      %s169 = scalar_select %p168, %s17, 1
      %p170 = scmp.lt.s32.totalorder %s167, 31
      %s171 = scalar_select %p170, %s167, 31
      %s172 = smul.addr %s169, 32
      %s173 = sadd.s32 %s171, %s172
      %s174 = smul.addr %s173, 8
      %s175 = scalar_lea.vmem %s2, %s174
      %s176 = smul.u32 8, %s18
      %p177 = scmp.lt.s32.totalorder %s17, 1
      %s178 = scalar_select %p177, %s17, 1
      %p179 = scmp.lt.s32.totalorder %s176, 31
      %s180 = scalar_select %p179, %s176, 31
      %s181 = smul.addr %s178, 32
      %s182 = sadd.s32 %s180, %s181
      %s183 = smul.addr %s182, 8
      %s184 = scalar_lea.vmem %s0, %s183
      %s185 = smul.u32 8, %s18
      %p186 = scmp.lt.s32.totalorder %s17, 1
      %s187 = scalar_select %p186, %s17, 1
      %s188 = smul.addr %s187, 2
      %s189 = scalar_lea.vmem %s1, %s188
      %s190 = smul.u32 8, %s18
      %p191 = scmp.lt.s32.totalorder %s17, 1
      %s192 = scalar_select %p191, %s17, 1
      %p193 = scmp.lt.s32.totalorder %s190, 31
      %s194 = scalar_select %p193, %s190, 31
      %s195 = smul.addr %s192, 32
      %s196 = sadd.s32 %s194, %s195
      %s197 = smul.addr %s196, 8
      %s198 = scalar_lea.vmem %s2, %s197
      %s199 = smul.u32 8, %s18
      %v200 = vld [vmem:[%s184] sm:$0xff]
      %v201 = vld [vmem:[%s184 + $0x8] sm:$0xff]
      %v202 = vld [vmem:[%s184 + $0x10] sm:$0xff]
      %v203 = vld [vmem:[%s184 + $0x18] sm:$0xff]
      %v204 = vld [vmem:[%s184 + $0x20] sm:$0xff]
      %v205 = vld [vmem:[%s184 + $0x28] sm:$0xff]
      %v206 = vld [vmem:[%s184 + $0x30] sm:$0xff]
      %v207 = vld [vmem:[%s184 + $0x38] sm:$0xff]
      %v208 = vld [vmem:[%s189] sm:$0x3]
      %v209 = vmul.f32 %v208, 0.00390625
      %v210 = vmul.f32 %v209, %v209
      %v212 = vrot.slane %v210, 7
      %v214 = vsub.f32 %v209, %v212
      %v215 = vlaneseq
      %v216 = vshrl.u32 %v215, 7
      %v217 = vsub.s32 0, %v216
      %v218 = vrot.slane %v209, %v217
      %v219 = vsub.f32 %v200, %v218
      %v220 = vsub.f32 %v201, %v218
      %v221 = vsub.f32 %v202, %v218
      %v222 = vsub.f32 %v203, %v218
      %v223 = vsub.f32 %v204, %v218
      %v224 = vsub.f32 %v205, %v218
      %v225 = vsub.f32 %v206, %v218
      %v226 = vsub.f32 %v207, %v218
      %v227 = vadd.f32 %v214, 1e-05
      %v228 = vrsqrt.pop %v227
      %v229 = vlaneseq
      %v230 = vshrl.u32 %v229, 7
      %v231 = vsub.s32 1, %v230
      %v232 = vrot.slane %v228, %v231
      %v233 = vmul.f32 %v219, %v232
      %v234 = vmul.f32 %v220, %v232
      %v235 = vmul.f32 %v221, %v232
      %v236 = vmul.f32 %v222, %v232
      %v237 = vmul.f32 %v223, %v232
      %v238 = vmul.f32 %v224, %v232
      %v239 = vmul.f32 %v225, %v232
      %v240 = vmul.f32 %v226, %v232
      %v241 = vmax.f32 %v233, 0.0
      %v242 = vmax.f32 %v234, 0.0
      %v243 = vmax.f32 %v235, 0.0
      %v244 = vmax.f32 %v236, 0.0
      %v245 = vmax.f32 %v237, 0.0
      %v246 = vmax.f32 %v238, 0.0
      %v247 = vmax.f32 %v239, 0.0
      %v248 = vmax.f32 %v240, 0.0
      %vm249 = vcmask 31744
      %250 = vst.msk [vmem:[%s198] sm:$0xff] %vm249, %v241
      %251 = vst.msk [vmem:[%s198 + $0x8] sm:$0xff] %vm249, %v242
      %252 = vst.msk [vmem:[%s198 + $0x10] sm:$0xff] %vm249, %v243
      %253 = vst.msk [vmem:[%s198 + $0x18] sm:$0xff] %vm249, %v244
      %254 = vst.msk [vmem:[%s198 + $0x20] sm:$0xff] %vm249, %v245
      %255 = vst.msk [vmem:[%s198 + $0x28] sm:$0xff] %vm249, %v246
      %256 = vst.msk [vmem:[%s198 + $0x30] sm:$0xff] %vm249, %v247
      %257 = vst.msk [vmem:[%s198 + $0x38] sm:$0xff] %vm249, %v248
      %s258 = smul.u32 8, %s18
      %p259 = scmp.lt.s32.totalorder %s17, 1
      %s260 = scalar_select %p259, %s17, 1
      %p261 = scmp.lt.s32.totalorder %s258, 31
      %s262 = scalar_select %p261, %s258, 31
      %s263 = smul.addr %s260, 32
      %s264 = sadd.s32 %s262, %s263
      %s265 = smul.addr %s264, 8
      %s266 = scalar_lea.vmem %s2, %s265
      // Predicated region
      $region29: #{resid_block_forward.5} parent=27 // pred_check
        %p267 = pneg %p99
      $region30: #{resid_block_forward.5} parent=27 // pred_check_branch
        %269 = sbr.rel (%p267) target = $region32
      $region31: #{resid_block_forward.5} parent=27 // pred_region
        %s270 = smul.u32 8, %s18
      $region32: #{resid_block_forward.5} parent=27 // pred_fallthru
        _
    $region28: #{resid_block_forward.5} parent=5 // pred_fallthru
      _
    %p271 = scmp.le.s32.totalorder 2, %s8
    // Predicated region
    $region33: #{resid_block_forward.5} parent=5 // pred_check
      %p272 = pneg %p271
    $region34: #{resid_block_forward.5} parent=5 // pred_check_branch
      %274 = sbr.rel (%p272) target = $region36
    $region35: #{resid_block_forward.5} parent=5 // pred_region
      %s275 = ssub.s32 %s8, 2
      // Predicated region
      $region37: #{resid_block_forward.5} parent=35 // pred_check
        %p276 = pneg %p105
      $region38: #{resid_block_forward.5} parent=35 // pred_check_branch
        %278 = sbr.rel (%p276) target = $region40
      $region39: #{resid_block_forward.5} parent=35 // pred_region
        %s279 = smul.u32 8, %s20
        %p280 = scmp.lt.s32.totalorder %s19, 1
        %s281 = scalar_select %p280, %s19, 1
        %p282 = scmp.lt.s32.totalorder %s279, 31
        %s283 = scalar_select %p282, %s279, 31
        %s284 = smul.addr %s281, 32
        %s285 = sadd.s32 %s283, %s284
        %s286 = smul.addr %s285, 8
        %s287 = scalar_lea.vmem %s2, %s286
      $region40: #{resid_block_forward.5} parent=35 // pred_fallthru
        _
    $region36: #{resid_block_forward.5} parent=5 // pred_fallthru
      _
  $region6: #{resid_block_forward.5} parent=0 // loop_footer
    %s12 = sadd.s32 1, %s8
  $region7: #{resid_block_forward.5} parent=0 // loop_footer_branch
    %7 = sbr.rel target = $region3
  $region8: #{resid_block_forward.5} parent=0 // loop_exit
    _

// kernel: resid_block_forward.4
$region0: #{resid_block_forward.4}
  #allocation0 [shape = 'u32[]', space=smem, size = 0x4, offset = 0x4, fixed_abs, tag = 'smem constant byte address 0x4 - core index']
  #allocation1 [shape = 'u32[144,128]{1,0:T(1,128)}', space=vmem, size = 0x12000, scoped, tag = 'internal scratch']
  %s0 = inlined_call_operand.vmem [shape: bf16[2,256,36], index: 0, kind: input, shape index: {}]
  %s1 = inlined_call_operand.vmem [shape: bf16[36,4], index: 1, kind: input, shape index: {}]
  %s2 = inlined_call_operand.vmem [shape: f32[1,4], index: 2, kind: input, shape index: {}]
  %s3 = inlined_call_operand.vmem [shape: f32[2,256,4], index: 3, kind: output, shape index: {0}]
  %s4 = inlined_call_operand.vmem [shape: f32[2,2,4], index: 4, kind: output, shape index: {1}]
  %5 = xla_tuple %s3, %s4
  %s6 = sld [smem:[#allocation0]]
  $region57: #{resid_block_forward.4} parent=0
    _
  %s8 = ssub.s32 1, %s6
  %s9 = scalar_select 0, %s8, %s6
  loop: start=0, step=1, limit=10
  $region2: #{resid_block_forward.4} parent=0 // loop_pre_header
    _
  $region3: #{resid_block_forward.4} parent=0 // loop_header
    %s11 = sphi 0, %s15
    %p12 = scmp.ge.s32.totalorder %s11, 10
    %s18 = sphi 0, %s30
    %s19 = sphi 0, %s26
    %s20 = sphi 0, %s18
    %s21 = sphi 0, %s19
    %s22 = sphi 0, %s20
    %s23 = sphi 0, %s21
    %s35 = sphi 0, %s37
    %s38 = sphi 0, %s35
    %s39 = sphi 0, %s38
    %s55 = sphi 0, %s39
    %s59 = sphi 0, %s59
    %s61 = sphi 0, %s59
    %s62 = sphi 0, %s61
    %s76 = sphi 0, %s62
    %s80 = sphi 0, %s80
    %s82 = sphi 0, %s80
    %s83 = sphi 0, %s82
    %s97 = sphi 0, %s83
    %s105 = sphi 0, %s107
    %s108 = sphi 0, %s105
    %s109 = sphi 0, %s108
    %s125 = sphi 0, %s109
    %s131 = sphi 0, %s133
    %s134 = sphi 0, %s131
    %s135 = sphi 0, %s134
    %s151 = sphi 0, %s135
  $region4: #{resid_block_forward.4} parent=0 // loop_header_branch
    %14 = sbr.rel (%p12) target = $region8
  $region5: #{resid_block_forward.4} parent=0 // loop_body
    %s16 = ssub.s32 %s11, 1
    %s17 = ssub.s32 %s11, 2
    %s24 = sadd.s32 1, %s19
    %p25 = scmp.ge.s32.totalorder %s24, 4
    %s26 = scalar_select %p25, 0, %s24
    %s27 = sadd.s32 1, %s18
    %s28 = scalar_select %p25, %s27, %s18
    %p29 = scmp.ge.s32.totalorder %s28, 2
    %s30 = scalar_select %p29, 0, %s28
    %s31 = ssub.s32 %s18, %s30
    %s32 = ssub.s32 %s19, %s26
    %s33 = sor.u32 %s31, %s32
    %p34 = scmp.eq.s32.totalorder %s33, 0
    %s36 = sadd.s32 %s35, 1
    %s37 = scalar_select %p34, %s35, %s36
    %p40 = pneg %p34
    %p41 = scmp.eq.s32.totalorder %s11, 7
    %p42 = por %p40, %p41
    %p43 = scmp.ne.s32.totalorder %s35, %s38
    %p44 = scmp.eq.s32.totalorder %s11, 0
    %p45 = por %p43, %p44
    %p46 = scmp.ne.s32.totalorder %s35, %s38
    %p47 = scmp.eq.s32.totalorder %s16, 7
    %p48 = por %p46, %p47
    %p49 = scmp.ne.s32.totalorder %s38, %s39
    %p50 = scmp.eq.s32.totalorder %s16, 0
    %p51 = por %p49, %p50
    %p52 = scmp.ne.s32.totalorder %s38, %s39
    %p53 = scmp.eq.s32.totalorder %s17, 7
    %p54 = por %p52, %p53
    %p56 = scmp.ne.s32.totalorder %s39, %s55
    %p57 = scmp.eq.s32.totalorder %s17, 0
    %p58 = por %p56, %p57
    %s60 = sadd.s32 %s59, 1
    %p63 = scmp.eq.s32.totalorder %s11, 7
    %p64 = scmp.ne.s32.totalorder %s59, %s61
    %p65 = scmp.eq.s32.totalorder %s11, 0
    %p66 = por %p64, %p65
    %p67 = scmp.ne.s32.totalorder %s59, %s61
    %p68 = scmp.eq.s32.totalorder %s16, 7
    %p69 = por %p67, %p68
    %p70 = scmp.ne.s32.totalorder %s61, %s62
    %p71 = scmp.eq.s32.totalorder %s16, 0
    %p72 = por %p70, %p71
    %p73 = scmp.ne.s32.totalorder %s61, %s62
    %p74 = scmp.eq.s32.totalorder %s17, 7
    %p75 = por %p73, %p74
    %p77 = scmp.ne.s32.totalorder %s62, %s76
    %p78 = scmp.eq.s32.totalorder %s17, 0
    %p79 = por %p77, %p78
    %s81 = sadd.s32 %s80, 1
    %p84 = scmp.eq.s32.totalorder %s11, 7
    %p85 = scmp.ne.s32.totalorder %s80, %s82
    %p86 = scmp.eq.s32.totalorder %s11, 0
    %p87 = por %p85, %p86
    %p88 = scmp.ne.s32.totalorder %s80, %s82
    %p89 = scmp.eq.s32.totalorder %s16, 7
    %p90 = por %p88, %p89
    %p91 = scmp.ne.s32.totalorder %s82, %s83
    %p92 = scmp.eq.s32.totalorder %s16, 0
    %p93 = por %p91, %p92
    %p94 = scmp.ne.s32.totalorder %s82, %s83
    %p95 = scmp.eq.s32.totalorder %s17, 7
    %p96 = por %p94, %p95
    %p98 = scmp.ne.s32.totalorder %s83, %s97
    %p99 = scmp.eq.s32.totalorder %s17, 0
    %p100 = por %p98, %p99
    %s101 = ssub.s32 %s18, %s30
    %s102 = ssub.s32 %s19, %s26
    %s103 = sor.u32 %s101, %s102
    %p104 = scmp.eq.s32.totalorder %s103, 0
    %s106 = sadd.s32 %s105, 1
    %s107 = scalar_select %p104, %s105, %s106
    %p110 = pneg %p104
    %p111 = scmp.eq.s32.totalorder %s11, 7
    %p112 = por %p110, %p111
    %p113 = scmp.ne.s32.totalorder %s105, %s108
    %p114 = scmp.eq.s32.totalorder %s11, 0
    %p115 = por %p113, %p114
    %p116 = scmp.ne.s32.totalorder %s105, %s108
    %p117 = scmp.eq.s32.totalorder %s16, 7
    %p118 = por %p116, %p117
    %p119 = scmp.ne.s32.totalorder %s108, %s109
    %p120 = scmp.eq.s32.totalorder %s16, 0
    %p121 = por %p119, %p120
    %p122 = scmp.ne.s32.totalorder %s108, %s109
    %p123 = scmp.eq.s32.totalorder %s17, 7
    %p124 = por %p122, %p123
    %p126 = scmp.ne.s32.totalorder %s109, %s125
    %p127 = scmp.eq.s32.totalorder %s17, 0
    %p128 = por %p126, %p127
    %s129 = ssub.s32 %s18, %s30
    %p130 = scmp.eq.s32.totalorder %s129, 0
    %s132 = sadd.s32 %s131, 1
    %s133 = scalar_select %p130, %s131, %s132
    %p136 = pneg %p130
    %p137 = scmp.eq.s32.totalorder %s11, 7
    %p138 = por %p136, %p137
    %p139 = scmp.ne.s32.totalorder %s131, %s134
    %p140 = scmp.eq.s32.totalorder %s11, 0
    %p141 = por %p139, %p140
    %p142 = scmp.ne.s32.totalorder %s131, %s134
    %p143 = scmp.eq.s32.totalorder %s16, 7
    %p144 = por %p142, %p143
    %p145 = scmp.ne.s32.totalorder %s134, %s135
    %p146 = scmp.eq.s32.totalorder %s16, 0
    %p147 = por %p145, %p146
    %p148 = scmp.ne.s32.totalorder %s134, %s135
    %p149 = scmp.eq.s32.totalorder %s17, 7
    %p150 = por %p148, %p149
    %p152 = scmp.ne.s32.totalorder %s135, %s151
    %p153 = scmp.eq.s32.totalorder %s17, 0
    %p154 = por %p152, %p153
    %p155 = scmp.le.s32.totalorder 1, %s11
    %p156 = scmp.lt.s32.totalorder %s11, 9
    %p157 = pnand %p155, %p156
    %p158 = pneg %p157
    // Predicated region
    $region9: #{resid_block_forward.4} parent=5 // pred_check
      _
    $region10: #{resid_block_forward.4} parent=5 // pred_check_branch
      %160 = sbr.rel (%p157) target = $region12
    $region11: #{resid_block_forward.4} parent=5 // pred_region
      %s161 = ssub.s32 %s11, 1
      // Predicated region
      $region13: #{resid_block_forward.4} parent=11 // pred_check
        %p162 = pneg %p72
      $region14: #{resid_block_forward.4} parent=11 // pred_check_branch
        %164 = sbr.rel (%p162) target = $region16
      $region15: #{resid_block_forward.4} parent=11 // pred_region
        _
      $region16: #{resid_block_forward.4} parent=11 // pred_fallthru
        _
      // Predicated region
      $region17: #{resid_block_forward.4} parent=11 // pred_check
        %p165 = pneg %p93
      $region18: #{resid_block_forward.4} parent=11 // pred_check_branch
        %167 = sbr.rel (%p165) target = $region20
      $region19: #{resid_block_forward.4} parent=11 // pred_region
        _
      $region20: #{resid_block_forward.4} parent=11 // pred_fallthru
        _
    $region12: #{resid_block_forward.4} parent=5 // pred_fallthru
      _
    %p168 = scmp.lt.s32.totalorder %s11, 8
    // Predicated region
    $region21: #{resid_block_forward.4} parent=5 // pred_check
      %p169 = pneg %p168
    $region22: #{resid_block_forward.4} parent=5 // pred_check_branch
      %171 = sbr.rel (%p169) target = $region24
    $region23: #{resid_block_forward.4} parent=5 // pred_region
      // Predicated region
      $region25: #{resid_block_forward.4} parent=23 // pred_check
        %p172 = pneg %p45
      $region26: #{resid_block_forward.4} parent=23 // pred_check_branch
        %174 = sbr.rel (%p172) target = $region28
      $region27: #{resid_block_forward.4} parent=23 // pred_region
        %s175 = smul.u32 8, %s19
        %p176 = scmp.lt.s32.totalorder %s18, 1
        %s177 = scalar_select %p176, %s18, 1
        %p178 = scmp.lt.s32.totalorder %s175, 31
        %s179 = scalar_select %p178, %s175, 31
        %s180 = smul.addr %s177, 32
        %s181 = sadd.s32 %s179, %s180
        %s182 = smul.addr %s181, 4
        %s183 = scalar_lea.vmem %s0, %s182
        %s184 = smul.u32 8, %s19
      $region28: #{resid_block_forward.4} parent=23 // pred_fallthru
        _
    $region24: #{resid_block_forward.4} parent=5 // pred_fallthru
      _
    %p185 = scmp.le.s32.totalorder 1, %s11
    %p186 = scmp.lt.s32.totalorder %s11, 9
    %p187 = pnand %p185, %p186
    %p188 = pneg %p187
    // Predicated region
    $region29: #{resid_block_forward.4} parent=5 // pred_check
      _
    $region30: #{resid_block_forward.4} parent=5 // pred_check_branch
      %190 = sbr.rel (%p187) target = $region32
    $region31: #{resid_block_forward.4} parent=5 // pred_region
      %s191 = ssub.s32 %s11, 1
      %s192 = smul.u32 8, %s21
      %p193 = scmp.lt.s32.totalorder %s20, 1
      %s194 = scalar_select %p193, %s20, 1
      %p195 = scmp.lt.s32.totalorder %s192, 31
      %s196 = scalar_select %p195, %s192, 31
      %s197 = smul.addr %s194, 32
      %s198 = sadd.s32 %s196, %s197
      %s199 = smul.addr %s198, 4
      %s200 = scalar_lea.vmem %s0, %s199
      %p201 = pneg %p51
      %p202 = pneg %p48
      %p203 = pneg %p72
      %p204 = pneg %p69
      %p205 = pneg %p93
      %p206 = pneg %p90
      %p207 = pneg %p121
      %p208 = pneg %p118
      %s209 = smul.u32 8, %s21
      %p210 = scmp.lt.s32.totalorder %s20, 1
      %s211 = scalar_select %p210, %s20, 1
      %p212 = scmp.lt.s32.totalorder %s209, 31
      %s213 = scalar_select %p212, %s209, 31
      %s214 = smul.addr %s211, 32
      %s215 = sadd.s32 %s213, %s214
      %s216 = smul.addr %s215, 8
      %s217 = scalar_lea.vmem %s3, %s216
      %p218 = pneg %p147
      %p219 = pneg %p144
      %p220 = scmp.lt.s32.totalorder %s20, 1
      %s221 = scalar_select %p220, %s20, 1
      %s222 = smul.addr %s221, 2
      %s223 = scalar_lea.vmem %s4, %s222
      %s224 = smul.u32 8, %s21
      %p225 = scmp.lt.s32.totalorder %s20, 1
      %s226 = scalar_select %p225, %s20, 1
      %p227 = scmp.lt.s32.totalorder %s224, 31
      %s228 = scalar_select %p227, %s224, 31
      %s229 = smul.addr %s226, 32
      %s230 = sadd.s32 %s228, %s229
      %s231 = smul.addr %s230, 4
      %s232 = scalar_lea.vmem %s0, %s231
      %s233 = smul.u32 8, %s21
      %s234 = smul.u32 8, %s21
      %p235 = scmp.lt.s32.totalorder %s20, 1
      %s236 = scalar_select %p235, %s20, 1
      %p237 = scmp.lt.s32.totalorder %s234, 31
      %s238 = scalar_select %p237, %s234, 31
      %s239 = smul.addr %s236, 32
      %s240 = sadd.s32 %s238, %s239
      %s241 = smul.addr %s240, 8
      %s242 = scalar_lea.vmem %s3, %s241
      %s243 = smul.u32 8, %s21
      %p244 = scmp.lt.s32.totalorder %s20, 1
      %s245 = scalar_select %p244, %s20, 1
      %s246 = smul.addr %s245, 2
      %s247 = scalar_lea.vmem %s4, %s246
      %v249 = vld [vmem:[%s232] sm:$0xf]
      %v250 = vld [vmem:[%s232 + $0x4] sm:$0xf]
      %v251 = vld [vmem:[%s232 + $0x8] sm:$0xf]
      %v252 = vld [vmem:[%s232 + $0xc] sm:$0xf]
      %v253 = vld [vmem:[%s232 + $0x10] sm:$0xf]
      %v254 = vld [vmem:[%s232 + $0x14] sm:$0xf]
      %v255 = vld [vmem:[%s232 + $0x18] sm:$0xf]
      %v256 = vld [vmem:[%s232 + $0x1c] sm:$0xf]
      %v257 = vld [vmem:[%s1] sm:$0xf]
      %v258 = vld [vmem:[%s1 + $0x4] sm:$0xf]
      %v259 = vld [vmem:[%s1 + $0x8] sm:$0xf]
      %v260 = vld [vmem:[%s1 + $0xc] sm:$0xf]
      %v261 = vld [vmem:[%s1 + $0x10] sm:$0x3]
      %v262 = vld [vmem:[%s2] sm:$0x1]
      %v264 = vlaneseq
      %v265 = vshrl.u32 %v264, 7
      %v266 = vsub.s32 0, %v265
      %v267 = vrot.slane %v262, %v266
      %v277 = vunpack.c.l.b16 %v249
      %v278 = vunpack.c.l.b16 %v250
      %v279 = vunpack.c.l.b16 %v251
      %v280 = vunpack.c.l.b16 %v252
      %v281 = vunpack.c.l.b16 %v253
      %v282 = vunpack.c.l.b16 %v254
      %v283 = vunpack.c.l.b16 %v255
      %v284 = vunpack.c.l.b16 %v256
      %v285 = vpack.c.b16 %v278, %v277
      %v286 = vpack.c.b16 %v280, %v279
      %v287 = vpack.c.b16 %v282, %v281
      %v288 = vpack.c.b16 %v284, %v283
      %v294 = vunpack.c.l.b16 %v257
      %v295 = vunpack.c.l.b16 %v258
      %v296 = vunpack.c.l.b16 %v259
      %v297 = vunpack.c.l.b16 %v260
      %v298 = vunpack.c.l.b16 %v261
      %v299 = vpack.c.b16 %v295, %v294
      %v300 = vpack.c.b16 %v297, %v296
      %v301 = vpack.c.b16 %v298, %v298
      %vm304 = vcmask 293888
      %v306 = vsel %vm304, %v285, 0
      %v309 = vsel %vm304, %v286, 0
      %v312 = vsel %vm304, %v287, 0
      %v315 = vsel %vm304, %v288, 0
      %vm317 = vcmask 1041408
      %v319 = vsel %vm317, %v301, 0
      %321 = vmatprep.subr.bf16.mxu0 0
      %322 = vmatpush1.bf16.msra.mxu0 %v299
      %323 = vmatprep.subr.bf16.mxu0 0
      %324 = vmatpush1.bf16.msra.mxu0 %v300
      %325 = vmatprep.subr.bf16.mxu0 0
      %326 = vmatpush1.bf16.msra.mxu0 %v319
      %327 = vmatprep.subr.bf16.mxu0 0
      %328 = vmatpush1.bf16.msra.mxu0 0
      %329 = vmatprep.subr.bf16.mxu0 0
      %330 = vmatpush1.bf16.msra.mxu0 0
      %331 = vmatprep.subr.bf16.mxu0 0
      %332 = vmatpush1.bf16.msra.mxu0 0
      %333 = vmatprep.subr.bf16.mxu0 0
      %334 = vmatpush1.bf16.msra.mxu0 0
      %335 = vmatprep.subr.bf16.mxu0 0
      %336 = vmatpush1.bf16.msra.mxu0 0
      %337 = vmatprep.subr.bf16.mxu0 0
      %338 = vmatpush1.bf16.msra.mxu0 0
      %339 = vmatprep.subr.bf16.mxu0 0
      %340 = vmatpush1.bf16.msra.mxu0 0
      %341 = vmatprep.subr.bf16.mxu0 0
      %342 = vmatpush1.bf16.msra.mxu0 0
      %343 = vmatprep.subr.bf16.mxu0 0
      %344 = vmatpush1.bf16.msra.mxu0 0
      %345 = vmatprep.subr.bf16.mxu0 0
      %346 = vmatpush1.bf16.msra.mxu0 0
      %347 = vmatprep.subr.bf16.mxu0 0
      %348 = vmatpush1.bf16.msra.mxu0 0
      %349 = vmatprep.subr.bf16.mxu0 0
      %350 = vmatpush1.bf16.msra.mxu0 0
      %351 = vmatprep.subr.bf16.mxu0 0
      %352 = vmatpush1.bf16.msra.mxu0 0
      %353 = vmatprep.mubr.bf16.mxu0 0
      %354 = vmatmul.mubr.bf16.gmra.mrb[0].mxu0 %v306
      %v355 = vpop.f32.mrb[0].mxu0
      %v356 = vadd.f32 %v267, %v355
      %v357 = vpop.f32.mrb[0].mxu0
      %v358 = vpop.f32.mrb[0].mxu0
      %v359 = vadd.f32 %v267, %v358
      %v360 = vpop.f32.mrb[0].mxu0
      %361 = vmatprep.mubr.bf16.mxu0 0
      %362 = vmatmul.mubr.bf16.gmra.mrb[0].mxu0 %v309
      %v363 = vpop.f32.mrb[0].mxu0
      %v364 = vadd.f32 %v267, %v363
      %v365 = vpop.f32.mrb[0].mxu0
      %v366 = vpop.f32.mrb[0].mxu0
      %v367 = vadd.f32 %v267, %v366
      %v368 = vpop.f32.mrb[0].mxu0
      %369 = vmatprep.mubr.bf16.mxu0 0
      %370 = vmatmul.mubr.bf16.gmra.mrb[0].mxu0 %v312
      %v371 = vpop.f32.mrb[0].mxu0
      %v372 = vadd.f32 %v267, %v371
      %v373 = vpop.f32.mrb[0].mxu0
      %v374 = vpop.f32.mrb[0].mxu0
      %v375 = vadd.f32 %v267, %v374
      %v376 = vpop.f32.mrb[0].mxu0
      %377 = vmatprep.mubr.bf16.mxu0 0
      %378 = vmatmul.mubr.bf16.gmra.mrb[0].mxu0 %v315
      %v379 = vpop.f32.mrb[0].mxu0
      %v380 = vadd.f32 %v267, %v379
      %v381 = vpop.f32.mrb[0].mxu0
      %v382 = vpop.f32.mrb[0].mxu0
      %v383 = vadd.f32 %v267, %v382
      %v384 = vpop.f32.mrb[0].mxu0
      %385 = vdwg.mxu0
      %vm386 = vcmask 31744
      %387 = vst.msk [vmem:[%s242] sm:$0xff] %vm386, %v356
      %388 = vst.msk [vmem:[%s242 + $0x8] sm:$0xff] %vm386, %v359
      %389 = vst.msk [vmem:[%s242 + $0x10] sm:$0xff] %vm386, %v364
      %390 = vst.msk [vmem:[%s242 + $0x18] sm:$0xff] %vm386, %v367
      %391 = vst.msk [vmem:[%s242 + $0x20] sm:$0xff] %vm386, %v372
      %392 = vst.msk [vmem:[%s242 + $0x28] sm:$0xff] %vm386, %v375
      %393 = vst.msk [vmem:[%s242 + $0x30] sm:$0xff] %vm386, %v380
      %394 = vst.msk [vmem:[%s242 + $0x38] sm:$0xff] %vm386, %v383
      %p395 = scmp.eq.s32.totalorder %s21, 0
      // Predicated region
      $region33: #{resid_block_forward.4} parent=31 // pred_check
        %p396 = pneg %p395
      $region34: #{resid_block_forward.4} parent=31 // pred_check_branch
        %398 = sbr.rel (%p396) target = $region36
      $region35: #{resid_block_forward.4} parent=31 // pred_region
        %vm399 = vcmask 25600
        %400 = vst.msk [vmem:[%s247] sm:$0x3] %vm399, 0.0
      $region36: #{resid_block_forward.4} parent=31 // pred_fallthru
        _
      %v401 = vsel %vm386, %v356, 0.0
      %v402 = vsel %vm386, %v359, 0.0
      %v403 = vadd.f32 %v401, %v402
      %v404 = vsel %vm386, %v364, 0.0
      %v405 = vadd.f32 %v403, %v404
      %v406 = vsel %vm386, %v367, 0.0
      %v407 = vadd.f32 %v405, %v406
      %v408 = vsel %vm386, %v372, 0.0
      %v409 = vadd.f32 %v407, %v408
      %v410 = vsel %vm386, %v375, 0.0
      %v411 = vadd.f32 %v409, %v410
      %v412 = vsel %vm386, %v380, 0.0
      %v413 = vadd.f32 %v411, %v412
      %v414 = vsel %vm386, %v383, 0.0
      %v415 = vadd.f32 %v413, %v414
      %v416 = vrot.slane %v415, 4
      %v417 = vadd.f32 %v415, %v416
      %v418 = vrot.slane %v417, 2
      %v419 = vadd.f32 %v417, %v418
      %v420 = vrot.slane %v419, 1
      %v421 = vadd.f32 %v419, %v420
      %v422 = vmul.f32 %v356, %v356
      %v423 = vmul.f32 %v359, %v359
      %v424 = vmul.f32 %v364, %v364
      %v425 = vmul.f32 %v367, %v367
      %v426 = vmul.f32 %v372, %v372
      %v427 = vmul.f32 %v375, %v375
      %v428 = vmul.f32 %v380, %v380
      %v429 = vmul.f32 %v383, %v383
      %v430 = vsel %vm386, %v422, 0.0
      %v431 = vsel %vm386, %v423, 0.0
      %v432 = vadd.f32 %v430, %v431
      %v433 = vsel %vm386, %v424, 0.0
      %v434 = vadd.f32 %v432, %v433
      %v435 = vsel %vm386, %v425, 0.0
      %v436 = vadd.f32 %v434, %v435
      %v437 = vsel %vm386, %v426, 0.0
      %v438 = vadd.f32 %v436, %v437
      %v439 = vsel %vm386, %v427, 0.0
      %v440 = vadd.f32 %v438, %v439
      %v441 = vsel %vm386, %v428, 0.0
      %v442 = vadd.f32 %v440, %v441
      %v443 = vsel %vm386, %v429, 0.0
      %v444 = vadd.f32 %v442, %v443
      %v445 = vrot.slane %v444, 4
      %v446 = vadd.f32 %v444, %v445
      %v447 = vrot.slane %v446, 2
      %v448 = vadd.f32 %v446, %v447
      %v449 = vrot.slane %v448, 1
      %v450 = vadd.f32 %v448, %v449
      %v451 = vld [vmem:[%s247] sm:$0x3]
      %vm452 = vcmask 1040384
      %v453 = vsel %vm452, %v421, %v450
      %v454 = vadd.f32 %v451, %v453
      %vm455 = vcmask 25600
      %456 = vst.msk [vmem:[%s247] sm:$0x3] %vm455, %v454
      %s457 = smul.u32 8, %s21
      %p458 = scmp.lt.s32.totalorder %s20, 1
      %s459 = scalar_select %p458, %s20, 1
      %p460 = scmp.lt.s32.totalorder %s457, 31
      %s461 = scalar_select %p460, %s457, 31
      %s462 = smul.addr %s459, 32
      %s463 = sadd.s32 %s461, %s462
      %s464 = smul.addr %s463, 8
      %s465 = scalar_lea.vmem %s3, %s464
      %p466 = scmp.lt.s32.totalorder %s20, 1
      %s467 = scalar_select %p466, %s20, 1
      %s468 = smul.addr %s467, 2
      %s469 = scalar_lea.vmem %s4, %s468
      // Predicated region
      $region37: #{resid_block_forward.4} parent=31 // pred_check
        %p470 = pneg %p118
      $region38: #{resid_block_forward.4} parent=31 // pred_check_branch
        %472 = sbr.rel (%p470) target = $region40
      $region39: #{resid_block_forward.4} parent=31 // pred_region
        %s473 = smul.u32 8, %s21
      $region40: #{resid_block_forward.4} parent=31 // pred_fallthru
        _
      // Predicated region
      $region41: #{resid_block_forward.4} parent=31 // pred_check
        %p474 = pneg %p144
      $region42: #{resid_block_forward.4} parent=31 // pred_check_branch
        %476 = sbr.rel (%p474) target = $region44
      $region43: #{resid_block_forward.4} parent=31 // pred_region
        _
      $region44: #{resid_block_forward.4} parent=31 // pred_fallthru
        _
    $region32: #{resid_block_forward.4} parent=5 // pred_fallthru
      _
    %p477 = scmp.le.s32.totalorder 2, %s11
    // Predicated region
    $region45: #{resid_block_forward.4} parent=5 // pred_check
      %p478 = pneg %p477
    $region46: #{resid_block_forward.4} parent=5 // pred_check_branch
      %480 = sbr.rel (%p478) target = $region48
    $region47: #{resid_block_forward.4} parent=5 // pred_region
      %s481 = ssub.s32 %s11, 2
      // Predicated region
      $region49: #{resid_block_forward.4} parent=47 // pred_check
        %p482 = pneg %p124
      $region50: #{resid_block_forward.4} parent=47 // pred_check_branch
        %484 = sbr.rel (%p482) target = $region52
      $region51: #{resid_block_forward.4} parent=47 // pred_region
        %s485 = smul.u32 8, %s23
        %p486 = scmp.lt.s32.totalorder %s22, 1
        %s487 = scalar_select %p486, %s22, 1
        %p488 = scmp.lt.s32.totalorder %s485, 31
        %s489 = scalar_select %p488, %s485, 31
        %s490 = smul.addr %s487, 32
        %s491 = sadd.s32 %s489, %s490
        %s492 = smul.addr %s491, 8
        %s493 = scalar_lea.vmem %s3, %s492
      $region52: #{resid_block_forward.4} parent=47 // pred_fallthru
        _
      // Predicated region
      $region53: #{resid_block_forward.4} parent=47 // pred_check
        %p494 = pneg %p150
      $region54: #{resid_block_forward.4} parent=47 // pred_check_branch
        %496 = sbr.rel (%p494) target = $region56
      $region55: #{resid_block_forward.4} parent=47 // pred_region
        %p497 = scmp.lt.s32.totalorder %s22, 1
        %s498 = scalar_select %p497, %s22, 1
        %s499 = smul.addr %s498, 2
        %s500 = scalar_lea.vmem %s4, %s499
      $region56: #{resid_block_forward.4} parent=47 // pred_fallthru
        _
    $region48: #{resid_block_forward.4} parent=5 // pred_fallthru
      _
  $region6: #{resid_block_forward.4} parent=0 // loop_footer
    %s15 = sadd.s32 1, %s11
  $region7: #{resid_block_forward.4} parent=0 // loop_footer_branch
    %10 = sbr.rel target = $region3
  $region8: #{resid_block_forward.4} parent=0 // loop_exit
    _

// kernel: resid_block_forward.7
$region0: #{resid_block_forward.7}
  #allocation0 [shape = 'u32[]', space=smem, size = 0x4, offset = 0x4, fixed_abs, tag = 'smem constant byte address 0x4 - core index']
  #allocation1 [shape = 'u32[144,128]{1,0:T(1,128)}', space=vmem, size = 0x12000, scoped, tag = 'internal scratch']
  %s0 = inlined_call_operand.vmem [shape: f32[2,256,4], index: 0, kind: input, shape index: {}]
  %s1 = inlined_call_operand.vmem [shape: f32[2,2,4], index: 1, kind: input, shape index: {}]
  %s2 = inlined_call_operand.vmem [shape: f32[2,256,4], index: 2, kind: input, shape index: {}]
  %s3 = inlined_call_operand.vmem [shape: f32[2,256,4], index: 3, kind: output, shape index: {}]
  %s4 = sld [smem:[#allocation0]]
  $region45: #{resid_block_forward.7} parent=0
    _
  %s6 = ssub.s32 1, %s4
  %s7 = scalar_select 0, %s6, %s4
  loop: start=0, step=1, limit=10
  $region2: #{resid_block_forward.7} parent=0 // loop_pre_header
    _
  $region3: #{resid_block_forward.7} parent=0 // loop_header
    %s9 = sphi 0, %s13
    %p10 = scmp.ge.s32.totalorder %s9, 10
    %s16 = sphi 0, %s28
    %s17 = sphi 0, %s24
    %s18 = sphi 0, %s16
    %s19 = sphi 0, %s17
    %s20 = sphi 0, %s18
    %s21 = sphi 0, %s19
    %s33 = sphi 0, %s35
    %s36 = sphi 0, %s33
    %s37 = sphi 0, %s36
    %s53 = sphi 0, %s37
    %s59 = sphi 0, %s61
    %s62 = sphi 0, %s59
    %s63 = sphi 0, %s62
    %s79 = sphi 0, %s63
    %s87 = sphi 0, %s89
    %s90 = sphi 0, %s87
    %s91 = sphi 0, %s90
    %s107 = sphi 0, %s91
    %s115 = sphi 0, %s117
    %s118 = sphi 0, %s115
    %s119 = sphi 0, %s118
    %s135 = sphi 0, %s119
  $region4: #{resid_block_forward.7} parent=0 // loop_header_branch
    %12 = sbr.rel (%p10) target = $region8
  $region5: #{resid_block_forward.7} parent=0 // loop_body
    %s14 = ssub.s32 %s9, 1
    %s15 = ssub.s32 %s9, 2
    %s22 = sadd.s32 1, %s17
    %p23 = scmp.ge.s32.totalorder %s22, 4
    %s24 = scalar_select %p23, 0, %s22
    %s25 = sadd.s32 1, %s16
    %s26 = scalar_select %p23, %s25, %s16
    %p27 = scmp.ge.s32.totalorder %s26, 2
    %s28 = scalar_select %p27, 0, %s26
    %s29 = ssub.s32 %s16, %s28
    %s30 = ssub.s32 %s17, %s24
    %s31 = sor.u32 %s29, %s30
    %p32 = scmp.eq.s32.totalorder %s31, 0
    %s34 = sadd.s32 %s33, 1
    %s35 = scalar_select %p32, %s33, %s34
    %p38 = pneg %p32
    %p39 = scmp.eq.s32.totalorder %s9, 7
    %p40 = por %p38, %p39
    %p41 = scmp.ne.s32.totalorder %s33, %s36
    %p42 = scmp.eq.s32.totalorder %s9, 0
    %p43 = por %p41, %p42
    %p44 = scmp.ne.s32.totalorder %s33, %s36
    %p45 = scmp.eq.s32.totalorder %s14, 7
    %p46 = por %p44, %p45
    %p47 = scmp.ne.s32.totalorder %s36, %s37
    %p48 = scmp.eq.s32.totalorder %s14, 0
    %p49 = por %p47, %p48
    %p50 = scmp.ne.s32.totalorder %s36, %s37
    %p51 = scmp.eq.s32.totalorder %s15, 7
    %p52 = por %p50, %p51
    %p54 = scmp.ne.s32.totalorder %s37, %s53
    %p55 = scmp.eq.s32.totalorder %s15, 0
    %p56 = por %p54, %p55
    %s57 = ssub.s32 %s16, %s28
    %p58 = scmp.eq.s32.totalorder %s57, 0
    %s60 = sadd.s32 %s59, 1
    %s61 = scalar_select %p58, %s59, %s60
    %p64 = pneg %p58
    %p65 = scmp.eq.s32.totalorder %s9, 7
    %p66 = por %p64, %p65
    %p67 = scmp.ne.s32.totalorder %s59, %s62
    %p68 = scmp.eq.s32.totalorder %s9, 0
    %p69 = por %p67, %p68
    %p70 = scmp.ne.s32.totalorder %s59, %s62
    %p71 = scmp.eq.s32.totalorder %s14, 7
    %p72 = por %p70, %p71
    %p73 = scmp.ne.s32.totalorder %s62, %s63
    %p74 = scmp.eq.s32.totalorder %s14, 0
    %p75 = por %p73, %p74
    %p76 = scmp.ne.s32.totalorder %s62, %s63
    %p77 = scmp.eq.s32.totalorder %s15, 7
    %p78 = por %p76, %p77
    %p80 = scmp.ne.s32.totalorder %s63, %s79
    %p81 = scmp.eq.s32.totalorder %s15, 0
    %p82 = por %p80, %p81
    %s83 = ssub.s32 %s16, %s28
    %s84 = ssub.s32 %s17, %s24
    %s85 = sor.u32 %s83, %s84
    %p86 = scmp.eq.s32.totalorder %s85, 0
    %s88 = sadd.s32 %s87, 1
    %s89 = scalar_select %p86, %s87, %s88
    %p92 = pneg %p86
    %p93 = scmp.eq.s32.totalorder %s9, 7
    %p94 = por %p92, %p93
    %p95 = scmp.ne.s32.totalorder %s87, %s90
    %p96 = scmp.eq.s32.totalorder %s9, 0
    %p97 = por %p95, %p96
    %p98 = scmp.ne.s32.totalorder %s87, %s90
    %p99 = scmp.eq.s32.totalorder %s14, 7
    %p100 = por %p98, %p99
    %p101 = scmp.ne.s32.totalorder %s90, %s91
    %p102 = scmp.eq.s32.totalorder %s14, 0
    %p103 = por %p101, %p102
    %p104 = scmp.ne.s32.totalorder %s90, %s91
    %p105 = scmp.eq.s32.totalorder %s15, 7
    %p106 = por %p104, %p105
    %p108 = scmp.ne.s32.totalorder %s91, %s107
    %p109 = scmp.eq.s32.totalorder %s15, 0
    %p110 = por %p108, %p109
    %s111 = ssub.s32 %s16, %s28
    %s112 = ssub.s32 %s17, %s24
    %s113 = sor.u32 %s111, %s112
    %p114 = scmp.eq.s32.totalorder %s113, 0
    %s116 = sadd.s32 %s115, 1
    %s117 = scalar_select %p114, %s115, %s116
    %p120 = pneg %p114
    %p121 = scmp.eq.s32.totalorder %s9, 7
    %p122 = por %p120, %p121
    %p123 = scmp.ne.s32.totalorder %s115, %s118
    %p124 = scmp.eq.s32.totalorder %s9, 0
    %p125 = por %p123, %p124
    %p126 = scmp.ne.s32.totalorder %s115, %s118
    %p127 = scmp.eq.s32.totalorder %s14, 7
    %p128 = por %p126, %p127
    %p129 = scmp.ne.s32.totalorder %s118, %s119
    %p130 = scmp.eq.s32.totalorder %s14, 0
    %p131 = por %p129, %p130
    %p132 = scmp.ne.s32.totalorder %s118, %s119
    %p133 = scmp.eq.s32.totalorder %s15, 7
    %p134 = por %p132, %p133
    %p136 = scmp.ne.s32.totalorder %s119, %s135
    %p137 = scmp.eq.s32.totalorder %s15, 0
    %p138 = por %p136, %p137
    %p139 = scmp.le.s32.totalorder 1, %s9
    %p140 = scmp.lt.s32.totalorder %s9, 9
    %p141 = pnand %p139, %p140
    %p142 = pneg %p141
    // Predicated region
    $region9: #{resid_block_forward.7} parent=5 // pred_check
      _
    $region10: #{resid_block_forward.7} parent=5 // pred_check_branch
      %144 = sbr.rel (%p141) target = $region12
    $region11: #{resid_block_forward.7} parent=5 // pred_region
      %s145 = ssub.s32 %s9, 1
    $region12: #{resid_block_forward.7} parent=5 // pred_fallthru
      _
    %p146 = scmp.lt.s32.totalorder %s9, 8
    // Predicated region
    $region13: #{resid_block_forward.7} parent=5 // pred_check
      %p147 = pneg %p146
    $region14: #{resid_block_forward.7} parent=5 // pred_check_branch
      %149 = sbr.rel (%p147) target = $region16
    $region15: #{resid_block_forward.7} parent=5 // pred_region
      // Predicated region
      $region17: #{resid_block_forward.7} parent=15 // pred_check
        %p150 = pneg %p43
      $region18: #{resid_block_forward.7} parent=15 // pred_check_branch
        %152 = sbr.rel (%p150) target = $region20
      $region19: #{resid_block_forward.7} parent=15 // pred_region
        %s153 = smul.u32 8, %s17
        %p154 = scmp.lt.s32.totalorder %s16, 1
        %s155 = scalar_select %p154, %s16, 1
        %p156 = scmp.lt.s32.totalorder %s153, 31
        %s157 = scalar_select %p156, %s153, 31
        %s158 = smul.addr %s155, 32
        %s159 = sadd.s32 %s157, %s158
        %s160 = smul.addr %s159, 8
        %s161 = scalar_lea.vmem %s0, %s160
        %s162 = smul.u32 8, %s17
      $region20: #{resid_block_forward.7} parent=15 // pred_fallthru
        _
      // Predicated region
      $region21: #{resid_block_forward.7} parent=15 // pred_check
        %p163 = pneg %p69
      $region22: #{resid_block_forward.7} parent=15 // pred_check_branch
        %165 = sbr.rel (%p163) target = $region24
      $region23: #{resid_block_forward.7} parent=15 // pred_region
        %p166 = scmp.lt.s32.totalorder %s16, 1
        %s167 = scalar_select %p166, %s16, 1
        %s168 = smul.addr %s167, 2
        %s169 = scalar_lea.vmem %s1, %s168
      $region24: #{resid_block_forward.7} parent=15 // pred_fallthru
        _
      // Predicated region
      $region25: #{resid_block_forward.7} parent=15 // pred_check
        %p170 = pneg %p97
      $region26: #{resid_block_forward.7} parent=15 // pred_check_branch
        %172 = sbr.rel (%p170) target = $region28
      $region27: #{resid_block_forward.7} parent=15 // pred_region
        %s173 = smul.u32 8, %s17
        %p174 = scmp.lt.s32.totalorder %s16, 1
        %s175 = scalar_select %p174, %s16, 1
        %p176 = scmp.lt.s32.totalorder %s173, 31
        %s177 = scalar_select %p176, %s173, 31
        %s178 = smul.addr %s175, 32
        %s179 = sadd.s32 %s177, %s178
        %s180 = smul.addr %s179, 8
        %s181 = scalar_lea.vmem %s2, %s180
        %s182 = smul.u32 8, %s17
      $region28: #{resid_block_forward.7} parent=15 // pred_fallthru
        _
    $region16: #{resid_block_forward.7} parent=5 // pred_fallthru
      _
    %p183 = scmp.le.s32.totalorder 1, %s9
    %p184 = scmp.lt.s32.totalorder %s9, 9
    %p185 = pnand %p183, %p184
    %p186 = pneg %p185
    // Predicated region
    $region29: #{resid_block_forward.7} parent=5 // pred_check
      _
    $region30: #{resid_block_forward.7} parent=5 // pred_check_branch
      %188 = sbr.rel (%p185) target = $region32
    $region31: #{resid_block_forward.7} parent=5 // pred_region
      %s189 = ssub.s32 %s9, 1
      %s190 = smul.u32 8, %s19
      %p191 = scmp.lt.s32.totalorder %s18, 1
      %s192 = scalar_select %p191, %s18, 1
      %p193 = scmp.lt.s32.totalorder %s190, 31
      %s194 = scalar_select %p193, %s190, 31
      %s195 = smul.addr %s192, 32
      %s196 = sadd.s32 %s194, %s195
      %s197 = smul.addr %s196, 8
      %s198 = scalar_lea.vmem %s0, %s197
      %p199 = pneg %p49
      %p200 = pneg %p46
      %p201 = scmp.lt.s32.totalorder %s18, 1
      %s202 = scalar_select %p201, %s18, 1
      %s203 = smul.addr %s202, 2
      %s204 = scalar_lea.vmem %s1, %s203
      %p205 = pneg %p75
      %p206 = pneg %p72
      %s207 = smul.u32 8, %s19
      %p208 = scmp.lt.s32.totalorder %s18, 1
      %s209 = scalar_select %p208, %s18, 1
      %p210 = scmp.lt.s32.totalorder %s207, 31
      %s211 = scalar_select %p210, %s207, 31
      %s212 = smul.addr %s209, 32
      %s213 = sadd.s32 %s211, %s212
      %s214 = smul.addr %s213, 8
      %s215 = scalar_lea.vmem %s2, %s214
      %p216 = pneg %p103
      %p217 = pneg %p100
      %p218 = pneg %p131
      %p219 = pneg %p128
      %s220 = smul.u32 8, %s19
      %p221 = scmp.lt.s32.totalorder %s18, 1
      %s222 = scalar_select %p221, %s18, 1
      %p223 = scmp.lt.s32.totalorder %s220, 31
      %s224 = scalar_select %p223, %s220, 31
      %s225 = smul.addr %s222, 32
      %s226 = sadd.s32 %s224, %s225
      %s227 = smul.addr %s226, 8
      %s228 = scalar_lea.vmem %s3, %s227
      %s229 = smul.u32 8, %s19
      %p230 = scmp.lt.s32.totalorder %s18, 1
      %s231 = scalar_select %p230, %s18, 1
      %p232 = scmp.lt.s32.totalorder %s229, 31
      %s233 = scalar_select %p232, %s229, 31
      %s234 = smul.addr %s231, 32
      %s235 = sadd.s32 %s233, %s234
      %s236 = smul.addr %s235, 8
      %s237 = scalar_lea.vmem %s0, %s236
      %s238 = smul.u32 8, %s19
      %p239 = scmp.lt.s32.totalorder %s18, 1
      %s240 = scalar_select %p239, %s18, 1
      %s241 = smul.addr %s240, 2
      %s242 = scalar_lea.vmem %s1, %s241
      %s243 = smul.u32 8, %s19
      %p244 = scmp.lt.s32.totalorder %s18, 1
      %s245 = scalar_select %p244, %s18, 1
      %p246 = scmp.lt.s32.totalorder %s243, 31
      %s247 = scalar_select %p246, %s243, 31
      %s248 = smul.addr %s245, 32
      %s249 = sadd.s32 %s247, %s248
      %s250 = smul.addr %s249, 8
      %s251 = scalar_lea.vmem %s2, %s250
      %s252 = smul.u32 8, %s19
      %s253 = smul.u32 8, %s19
      %p254 = scmp.lt.s32.totalorder %s18, 1
      %s255 = scalar_select %p254, %s18, 1
      %p256 = scmp.lt.s32.totalorder %s253, 31
      %s257 = scalar_select %p256, %s253, 31
      %s258 = smul.addr %s255, 32
      %s259 = sadd.s32 %s257, %s258
      %s260 = smul.addr %s259, 8
      %s261 = scalar_lea.vmem %s3, %s260
      %s262 = smul.u32 8, %s19
      %v263 = vld [vmem:[%s237] sm:$0xff]
      %v264 = vld [vmem:[%s237 + $0x8] sm:$0xff]
      %v265 = vld [vmem:[%s237 + $0x10] sm:$0xff]
      %v266 = vld [vmem:[%s237 + $0x18] sm:$0xff]
      %v267 = vld [vmem:[%s237 + $0x20] sm:$0xff]
      %v268 = vld [vmem:[%s237 + $0x28] sm:$0xff]
      %v269 = vld [vmem:[%s237 + $0x30] sm:$0xff]
      %v270 = vld [vmem:[%s237 + $0x38] sm:$0xff]
      %v271 = vld [vmem:[%s242] sm:$0x3]
      %v272 = vmul.f32 %v271, 0.00390625
      %v273 = vmul.f32 %v272, %v272
      %v275 = vrot.slane %v273, 7
      %v277 = vsub.f32 %v272, %v275
      %v278 = vlaneseq
      %v279 = vshrl.u32 %v278, 7
      %v280 = vsub.s32 0, %v279
      %v281 = vrot.slane %v272, %v280
      %v282 = vsub.f32 %v263, %v281
      %v283 = vsub.f32 %v264, %v281
      %v284 = vsub.f32 %v265, %v281
      %v285 = vsub.f32 %v266, %v281
      %v286 = vsub.f32 %v267, %v281
      %v287 = vsub.f32 %v268, %v281
      %v288 = vsub.f32 %v269, %v281
      %v289 = vsub.f32 %v270, %v281
      %v290 = vadd.f32 %v277, 1e-05
      %v291 = vrsqrt.pop %v290
      %v292 = vlaneseq
      %v293 = vshrl.u32 %v292, 7
      %v294 = vsub.s32 1, %v293
      %v295 = vrot.slane %v291, %v294
      %v296 = vmul.f32 %v282, %v295
      %v297 = vmul.f32 %v283, %v295
      %v298 = vmul.f32 %v284, %v295
      %v299 = vmul.f32 %v285, %v295
      %v300 = vmul.f32 %v286, %v295
      %v301 = vmul.f32 %v287, %v295
      %v302 = vmul.f32 %v288, %v295
      %v303 = vmul.f32 %v289, %v295
      %v304 = vld [vmem:[%s251] sm:$0xff]
      %v305 = vld [vmem:[%s251 + $0x8] sm:$0xff]
      %v306 = vld [vmem:[%s251 + $0x10] sm:$0xff]
      %v307 = vld [vmem:[%s251 + $0x18] sm:$0xff]
      %v308 = vld [vmem:[%s251 + $0x20] sm:$0xff]
      %v309 = vld [vmem:[%s251 + $0x28] sm:$0xff]
      %v310 = vld [vmem:[%s251 + $0x30] sm:$0xff]
      %v311 = vld [vmem:[%s251 + $0x38] sm:$0xff]
      %v312 = vadd.f32 %v296, %v304
      %v313 = vadd.f32 %v297, %v305
      %v314 = vadd.f32 %v298, %v306
      %v315 = vadd.f32 %v299, %v307
      %v316 = vadd.f32 %v300, %v308
      %v317 = vadd.f32 %v301, %v309
      %v318 = vadd.f32 %v302, %v310
      %v319 = vadd.f32 %v303, %v311
      %vm320 = vcmask 31744
      %321 = vst.msk [vmem:[%s261] sm:$0xff] %vm320, %v312
      %322 = vst.msk [vmem:[%s261 + $0x8] sm:$0xff] %vm320, %v313
      %323 = vst.msk [vmem:[%s261 + $0x10] sm:$0xff] %vm320, %v314
      %324 = vst.msk [vmem:[%s261 + $0x18] sm:$0xff] %vm320, %v315
      %325 = vst.msk [vmem:[%s261 + $0x20] sm:$0xff] %vm320, %v316
      %326 = vst.msk [vmem:[%s261 + $0x28] sm:$0xff] %vm320, %v317
      %327 = vst.msk [vmem:[%s261 + $0x30] sm:$0xff] %vm320, %v318
      %328 = vst.msk [vmem:[%s261 + $0x38] sm:$0xff] %vm320, %v319
      %s329 = smul.u32 8, %s19
      %p330 = scmp.lt.s32.totalorder %s18, 1
      %s331 = scalar_select %p330, %s18, 1
      %p332 = scmp.lt.s32.totalorder %s329, 31
      %s333 = scalar_select %p332, %s329, 31
      %s334 = smul.addr %s331, 32
      %s335 = sadd.s32 %s333, %s334
      %s336 = smul.addr %s335, 8
      %s337 = scalar_lea.vmem %s3, %s336
      // Predicated region
      $region33: #{resid_block_forward.7} parent=31 // pred_check
        %p338 = pneg %p128
      $region34: #{resid_block_forward.7} parent=31 // pred_check_branch
        %340 = sbr.rel (%p338) target = $region36
      $region35: #{resid_block_forward.7} parent=31 // pred_region
        %s341 = smul.u32 8, %s19
      $region36: #{resid_block_forward.7} parent=31 // pred_fallthru
        _
    $region32: #{resid_block_forward.7} parent=5 // pred_fallthru
      _
    %p342 = scmp.le.s32.totalorder 2, %s9
    // Predicated region
    $region37: #{resid_block_forward.7} parent=5 // pred_check
      %p343 = pneg %p342
    $region38: #{resid_block_forward.7} parent=5 // pred_check_branch
      %345 = sbr.rel (%p343) target = $region40
    $region39: #{resid_block_forward.7} parent=5 // pred_region
      %s346 = ssub.s32 %s9, 2
      // Predicated region
      $region41: #{resid_block_forward.7} parent=39 // pred_check
        %p347 = pneg %p134
      $region42: #{resid_block_forward.7} parent=39 // pred_check_branch
        %349 = sbr.rel (%p347) target = $region44
      $region43: #{resid_block_forward.7} parent=39 // pred_region
        %s350 = smul.u32 8, %s21
        %p351 = scmp.lt.s32.totalorder %s20, 1
        %s352 = scalar_select %p351, %s20, 1
        %p353 = scmp.lt.s32.totalorder %s350, 31
        %s354 = scalar_select %p353, %s350, 31
        %s355 = smul.addr %s352, 32
        %s356 = sadd.s32 %s354, %s355
        %s357 = smul.addr %s356, 8
        %s358 = scalar_lea.vmem %s3, %s357
      $region44: #{resid_block_forward.7} parent=39 // pred_fallthru
        _
    $region40: #{resid_block_forward.7} parent=5 // pred_fallthru
      _
  $region6: #{resid_block_forward.7} parent=0 // loop_footer
    %s13 = sadd.s32 1, %s9
  $region7: #{resid_block_forward.7} parent=0 // loop_footer_branch
    %8 = sbr.rel target = $region3
  $region8: #{resid_block_forward.7} parent=0 // loop_exit
    _

</llo_original>
